<compile_context>
chip_gen: v6e
topology: v6e:2x2x1
jax: 0.10.0
libtpu: 0.0.40
codegen_flags: <defaults>
</compile_context>

<pallas_src>
import functools

import jax
import jax.numpy as jnp
from jax.experimental import pallas as pl
from jax.experimental.pallas import tpu as pltpu


def _supcon_kernel(lab_a_ref, lab_c_ref, anchor_ref, contrast_ref, loss_ref, *,
                   temperature, base_temperature, mxu_dtype):
    tb = anchor_ref.shape[0]            # anchor rows in this tile (block_b)
    m = contrast_ref.shape[1]           # total contrast columns (V * B)
    i0 = pl.program_id(0) * tb          # global index of the first anchor row

    a = anchor_ref[...]                 # [tB, D]
    c = contrast_ref[...]               # [D, M] — MXU-native, no RHS transpose
    if mxu_dtype is not None:
        a = a.astype(mxu_dtype)
        c = c.astype(mxu_dtype)

    # One wide matmul on the MXU with f32 accumulation. Column v*B + b holds
    # <anchor_i, features[b, v]>, matching torch.cat(torch.unbind(f, 1), 0).T.
    logits = jnp.dot(a, c, preferred_element_type=jnp.float32)   # [tB, M]

    # Masks rebuilt in-kernel from labels (no dense masks streamed from HBM):
    # positives = same label (every view block); self-exclusion = global row
    # index == column index (only ever hits the view-0 column block).
    eq = lab_a_ref[...] == lab_c_ref[...]                        # [tB, M] bool
    rows = i0 + jax.lax.broadcasted_iota(jnp.int32, (tb, m), 0)
    cols = jax.lax.broadcasted_iota(jnp.int32, (tb, m), 1)
    not_self = cols != rows
    pos = eq & not_self

    # Single fused pass: shift, scale by 1/T (fused with the subtract, in
    # f32), exponentiate (EUP), and reduce denominator / positive-sum / count.
    inv_t = jnp.float32(1.0 / temperature)
    row_max = jnp.max(logits, axis=1, keepdims=True)             # [tB, 1]
    s = (logits - row_max) * inv_t                               # [tB, M]
    e = jnp.where(not_self, jnp.exp(s), 0.0)
    denom = jnp.sum(e, axis=1, keepdims=True)                    # [tB, 1]
    pos_sum = jnp.sum(jnp.where(pos, s, 0.0), axis=1, keepdims=True)
    cnt = jnp.sum(eq.astype(jnp.float32), axis=1, keepdims=True) - 1.0

    # sum_pos(log_prob) = sum_pos(shifted) - cnt * log(denom).
    # NOTE: cnt == 0 (anchor with no positives, e.g. V == 1 with a unique
    # label) yields NaN, matching the PyTorch module — it will also poison the
    # final mean, exactly as the reference would.
    num = pos_sum - cnt * jnp.log(denom)
    loss_ref[...] = -(temperature / base_temperature) * (num / cnt)


def supcon_loss(features, labels, temperature=0.07, contrast_mode='one',
                base_temperature=0.07, block_b=None, mxu_dtype=None):
    """SupConLoss forward (contrast_mode='one') via a Pallas TPU kernel.

    features: [B, V, D]   labels: [B]
    mxu_dtype: optional dtype (e.g. jnp.bfloat16) to cast the matmul operands
        to; accumulation stays f32. Default None keeps the native dtype.
    """
    assert contrast_mode == 'one', "only contrast_mode='one' implemented"
    B, V, D = features.shape
    M = V * B

    # Per-generation VMEM capacity (v5e/v6e: 128 MiB, v7x: 64 MiB per TC).
    try:
        vmem_cap = int(pltpu.get_tpu_info().vmem_capacity_bytes)
    except Exception:
        vmem_cap = 64 * 1024 * 1024     # conservative fallback (v7x per-TC)

    # Batch-axis (anchor) tile. Full batch when small; otherwise 256 rows per
    # grid step, dropping to 128 when the f32 [tB, V*B] temporaries would eat
    # a large fraction of this chip's VMEM (matters on 64 MiB v7x).
    if block_b is None:
        if B <= 256:
            block_b = B
        else:
            block_b = 256
            if 6 * 256 * M * 4 > 0.4 * vmem_cap:
                block_b = 128
    if block_b != B and block_b % 8 != 0:
        block_b = B                     # keep the (8,128) sublane rule happy
    num_tiles = pl.cdiv(B, block_b)

    # Cheap one-time XLA glue: anchor slice, MXU-native [D, V*B] contrast slab
    # (column v*B + b = features[b, v, :]) and int32 label vectors. No dense
    # masks are built in HBM.
    anchor = features[:, 0, :]                                   # [B, D]
    contrast_t = jnp.transpose(features, (2, 1, 0)).reshape(D, M)  # [D, V*B]
    lab = labels.reshape(-1).astype(jnp.int32)
    lab_a = lab.reshape(B, 1)
    lab_c = jnp.tile(lab, V).reshape(1, M)                       # col v*B+b -> lab[b]

    # Scoped-VMEM budget sized to the tiles, clamped to ~85% of this
    # generation's physical capacity (leaves Mosaic internal-scratch headroom).
    itemsize = jnp.dtype(features.dtype).itemsize
    m_pad = max(M, 128)
    est = (D * m_pad * itemsize              # resident contrast (single-buffered)
           + 2 * block_b * D * itemsize      # anchor tile (double-buffered)
           + 6 * block_b * m_pad * 4         # f32/bool [tB, M] temporaries
           + 8 * m_pad * 4                   # tiled label row (sublane-padded)
           + 4 * block_b * 128 * 4           # anchor labels / output (padded)
           + (2 << 20))                      # slack
    vmem_limit = int(min(max(2 * est, 16 * 1024 * 1024), int(0.85 * vmem_cap)))

    kernel = functools.partial(
        _supcon_kernel,
        temperature=float(temperature),
        base_temperature=float(base_temperature),
        mxu_dtype=mxu_dtype)

    def build(resident_pipeline_mode):
        resident_kw = ({} if resident_pipeline_mode is None
                       else dict(pipeline_mode=resident_pipeline_mode))
        in_specs = [
            pl.BlockSpec((block_b, 1), lambda i: (i, 0)),          # anchor labels
            pl.BlockSpec((1, M), lambda i: (0, 0), **resident_kw),  # all labels (tiled)
            pl.BlockSpec((block_b, D), lambda i: (i, 0)),          # anchor features
            pl.BlockSpec((D, M), lambda i: (0, 0), **resident_kw),  # contrast slab
        ]
        return pl.pallas_call(
            kernel,
            grid=(num_tiles,),
            out_shape=jax.ShapeDtypeStruct((B, 1), jnp.float32),
            in_specs=in_specs,
            out_specs=pl.BlockSpec((block_b, 1), lambda i: (i, 0)),
            compiler_params=pltpu.CompilerParams(
                dimension_semantics=("parallel",),
                vmem_limit_bytes=vmem_limit),
        )

    try:
        # Single-buffer the grid-invariant operands (constant index_map): the
        # resident [D, V*B] contrast slab dominates VMEM, so this halves its
        # footprint without changing the DMA pattern.
        per_anchor = build(pl.Buffered(1))(lab_a, lab_c, anchor, contrast_t)
    except Exception:
        # Fall back to default double-buffering rather than failing the call.
        per_anchor = build(None)(lab_a, lab_c, anchor, contrast_t)

    # loss.view(anchor_count, batch_size).mean() with anchor_count == 1.
    return jnp.mean(per_anchor)


def supcon_loss_ref(features, labels, temperature=0.07, base_temperature=0.07):
    """Pure-JAX reference mirroring the PyTorch forward (contrast_mode='one')."""
    B, V, D = features.shape
    labels = labels.reshape(-1, 1)
    mask = (labels == labels.T).astype(jnp.float32)
    contrast = jnp.transpose(features, (1, 0, 2)).reshape(V * B, D)
    anchor = features[:, 0, :]
    adc = (anchor @ contrast.T) / temperature
    logits = adc - jnp.max(adc, axis=1, keepdims=True)
    mask = jnp.tile(mask, (1, V))
    logits_mask = jnp.ones_like(mask).at[jnp.arange(B), jnp.arange(B)].set(0.0)
    mask = mask * logits_mask
    exp_logits = jnp.exp(logits) * logits_mask
    logits = logits * logits_mask
    log_prob = logits - jnp.log(exp_logits.sum(1, keepdims=True))
    mlpp = (mask * log_prob).sum(1) / mask.sum(1)
    loss = -(temperature / base_temperature) * mlpp
    return loss.reshape(1, B).mean()


if __name__ == "__main__":
    key = jax.random.PRNGKey(0)
    kf, kl = jax.random.split(key)
    B, V, D = 8, 2, 32
    features = jax.random.normal(kf, (B, V, D), dtype=jnp.float32)
    # L2-normalize per view (typical SupCon usage; harmless either way)
    features = features / jnp.linalg.norm(features, axis=-1, keepdims=True)
    labels = jax.random.randint(kl, (B,), 0, 3, dtype=jnp.int32)

    out = supcon_loss(features, labels)
    out = jax.block_until_ready(out)

    ref = supcon_loss_ref(features, labels)
    assert jnp.allclose(out, ref, rtol=1e-4, atol=1e-5), (out, ref)
    print("KERNEL_OK")
</pallas_src>

<mosaic_0001>
module attributes {stable_mosaic.version = 11 : i64} {
  func.func @_supcon_kernel(%arg0: i32, %arg1: memref<8x1xi32, #tpu.memory_space<vmem>>, %arg2: memref<1x16xi32, #tpu.memory_space<vmem>>, %arg3: memref<8x32xf32, #tpu.memory_space<vmem>>, %arg4: memref<32x16xf32, #tpu.memory_space<vmem>>, %arg5: memref<8x1xf32, #tpu.memory_space<vmem>>) attributes {dimension_semantics = [#tpu.dimension_semantics<parallel>], iteration_bounds = array<i64: 1>, scalar_prefetch = 0 : i64, scratch_operands = 0 : i64, tpu.core_type = #tpu.core_type<tc>, window_params = [{transform_indices = @transform_0, window_bounds = array<i64: 8, 1>}, {pipeline_mode = #tpu.pipeline_mode<synchronous>, transform_indices = @transform_1, window_bounds = array<i64: 1, 16>}, {transform_indices = @transform_2, window_bounds = array<i64: 8, 32>}, {pipeline_mode = #tpu.pipeline_mode<synchronous>, transform_indices = @transform_3, window_bounds = array<i64: 32, 16>}, {transform_indices = @transform_4, window_bounds = array<i64: 8, 1>}]} {
    %c8_i32 = arith.constant 8 : i32
    %0 = arith.muli %arg0, %c8_i32 : i32
    %c0 = arith.constant 0 : index
    %c0_0 = arith.constant 0 : index
    %1 = vector.load %arg3[%c0, %c0_0] : memref<8x32xf32, #tpu.memory_space<vmem>>, vector<8x32xf32>
    %c0_1 = arith.constant 0 : index
    %c0_2 = arith.constant 0 : index
    %2 = vector.load %arg4[%c0_1, %c0_2] : memref<32x16xf32, #tpu.memory_space<vmem>>, vector<32x16xf32>
    %cst = arith.constant dense<0.000000e+00> : vector<8x16xf32>
    %3 = tpu.matmul %1, %2, %cst {dimension_numbers = #tpu.dot_dimension_numbers<[1], [0], [0], [1], [0, 0, 1, 1], [], []>} : vector<8x32xf32>, vector<32x16xf32>, vector<8x16xf32> -> vector<8x16xf32>
    %c0_3 = arith.constant 0 : index
    %c0_4 = arith.constant 0 : index
    %4 = vector.load %arg1[%c0_3, %c0_4] : memref<8x1xi32, #tpu.memory_space<vmem>>, vector<8x1xi32>
    %c0_5 = arith.constant 0 : index
    %c0_6 = arith.constant 0 : index
    %5 = vector.load %arg2[%c0_5, %c0_6] : memref<1x16xi32, #tpu.memory_space<vmem>>, vector<1x16xi32>
    %6 = vector.broadcast %4 : vector<8x1xi32> to vector<8x16xi32>
    %7 = vector.broadcast %5 : vector<1x16xi32> to vector<8x16xi32>
    %8 = arith.cmpi eq, %6, %7 : vector<8x16xi32>
    %9 = tpu.iota {dimensions = array<i32: 0>} : vector<8x16xi32>
    %10 = vector.broadcast %0 : i32 to vector<8x16xi32>
    %11 = arith.addi %10, %9 : vector<8x16xi32>
    %12 = tpu.iota {dimensions = array<i32: 1>} : vector<8x16xi32>
    %13 = arith.cmpi ne, %12, %11 : vector<8x16xi32>
    %14 = arith.andi %8, %13 : vector<8x16xi1>
    %cst_7 = arith.constant dense<0xFF800000> : vector<8xf32>
    %15 = vector.multi_reduction <maximumf>, %3, %cst_7 [1] : vector<8x16xf32> to vector<8xf32>
    %16 = vector.shape_cast %15 : vector<8xf32> to vector<8x1xf32>
    %17 = vector.broadcast %16 : vector<8x1xf32> to vector<8x16xf32>
    %18 = arith.subf %3, %17 : vector<8x16xf32>
    %cst_8 = arith.constant 14.2857141 : f32
    %19 = vector.broadcast %cst_8 : f32 to vector<8x16xf32>
    %20 = arith.mulf %18, %19 : vector<8x16xf32>
    %21 = math.exp %20 : vector<8x16xf32>
    %cst_9 = arith.constant 0.000000e+00 : f32
    %22 = vector.broadcast %cst_9 : f32 to vector<8x16xf32>
    %23 = arith.select %13, %21, %22 : vector<8x16xi1>, vector<8x16xf32>
    %cst_10 = arith.constant dense<0.000000e+00> : vector<8xf32>
    %24 = vector.multi_reduction <add>, %23, %cst_10 [1] : vector<8x16xf32> to vector<8xf32>
    %25 = vector.shape_cast %24 : vector<8xf32> to vector<8x1xf32>
    %cst_11 = arith.constant 0.000000e+00 : f32
    %26 = vector.broadcast %cst_11 : f32 to vector<8x16xf32>
    %27 = arith.select %14, %20, %26 : vector<8x16xi1>, vector<8x16xf32>
    %cst_12 = arith.constant dense<0.000000e+00> : vector<8xf32>
    %28 = vector.multi_reduction <add>, %27, %cst_12 [1] : vector<8x16xf32> to vector<8xf32>
    %29 = vector.shape_cast %28 : vector<8xf32> to vector<8x1xf32>
    %30 = arith.extui %8 : vector<8x16xi1> to vector<8x16xi32>
    %31 = arith.sitofp %30 : vector<8x16xi32> to vector<8x16xf32>
    %cst_13 = arith.constant dense<0.000000e+00> : vector<8xf32>
    %32 = vector.multi_reduction <add>, %31, %cst_13 [1] : vector<8x16xf32> to vector<8xf32>
    %33 = vector.shape_cast %32 : vector<8xf32> to vector<8x1xf32>
    %cst_14 = arith.constant 1.000000e+00 : f32
    %34 = vector.broadcast %cst_14 : f32 to vector<8x1xf32>
    %35 = arith.subf %33, %34 : vector<8x1xf32>
    %36 = math.log %25 : vector<8x1xf32>
    %37 = arith.mulf %35, %36 : vector<8x1xf32>
    %38 = arith.subf %29, %37 : vector<8x1xf32>
    %39 = arith.divf %38, %35 : vector<8x1xf32>
    %cst_15 = arith.constant -1.000000e+00 : f32
    %40 = vector.broadcast %cst_15 : f32 to vector<8x1xf32>
    %41 = arith.mulf %40, %39 : vector<8x1xf32>
    %c0_16 = arith.constant 0 : index
    %c0_17 = arith.constant 0 : index
    %42 = vector.load %arg5[%c0_16, %c0_17] : memref<8x1xf32, #tpu.memory_space<vmem>>, vector<8x1xf32>
    tpu.vector_store %arg5[%c0_16, %c0_17], %41 {strides = array<i32>} : memref<8x1xf32, #tpu.memory_space<vmem>>, vector<8x1xf32>,
    return
  }
  func.func @transform_0(%arg0: i32) -> (i32, i32) {
    %c0_i32 = arith.constant 0 : i32
    %c0_i32_0 = arith.constant 0 : i32
    return %arg0, %c0_i32 : i32, i32
  }
  func.func @transform_1(%arg0: i32) -> (i32, i32) {
    %c0_i32 = arith.constant 0 : i32
    %c0_i32_0 = arith.constant 0 : i32
    %c0_i32_1 = arith.constant 0 : i32
    return %c0_i32, %c0_i32_0 : i32, i32
  }
  func.func @transform_2(%arg0: i32) -> (i32, i32) {
    %c0_i32 = arith.constant 0 : i32
    %c0_i32_0 = arith.constant 0 : i32
    return %arg0, %c0_i32 : i32, i32
  }
  func.func @transform_3(%arg0: i32) -> (i32, i32) {
    %c0_i32 = arith.constant 0 : i32
    %c0_i32_0 = arith.constant 0 : i32
    %c0_i32_1 = arith.constant 0 : i32
    return %c0_i32, %c0_i32_0 : i32, i32
  }
  func.func @transform_4(%arg0: i32) -> (i32, i32) {
    %c0_i32 = arith.constant 0 : i32
    %c0_i32_0 = arith.constant 0 : i32
    return %arg0, %c0_i32 : i32, i32
  }
}

module attributes {stable_mosaic.version = 11 : i64} {
  func.func @_supcon_kernel(%arg0: i32, %arg1: memref<8x1xi32, #tpu.memory_space<vmem>>, %arg2: memref<1x16xi32, #tpu.memory_space<vmem>>, %arg3: memref<8x32xf32, #tpu.memory_space<vmem>>, %arg4: memref<32x16xf32, #tpu.memory_space<vmem>>, %arg5: memref<8x1xf32, #tpu.memory_space<vmem>>) attributes {dimension_semantics = [#tpu.dimension_semantics<parallel>], iteration_bounds = array<i64: 1>, scalar_prefetch = 0 : i64, scratch_operands = 0 : i64, tpu.core_type = #tpu.core_type<tc>, window_params = [{transform_indices = @transform_0, window_bounds = array<i64: 8, 1>}, {pipeline_mode = #tpu.pipeline_mode<synchronous>, transform_indices = @transform_1, window_bounds = array<i64: 1, 16>}, {transform_indices = @transform_2, window_bounds = array<i64: 8, 32>}, {pipeline_mode = #tpu.pipeline_mode<synchronous>, transform_indices = @transform_3, window_bounds = array<i64: 32, 16>}, {transform_indices = @transform_4, window_bounds = array<i64: 8, 1>}]} {
    %c8_i32 = arith.constant 8 : i32
    %0 = arith.muli %arg0, %c8_i32 : i32
    %c0 = arith.constant 0 : index
    %c0_0 = arith.constant 0 : index
    %1 = vector.load %arg3[%c0, %c0_0] : memref<8x32xf32, #tpu.memory_space<vmem>>, vector<8x32xf32>
    %c0_1 = arith.constant 0 : index
    %c0_2 = arith.constant 0 : index
    %2 = vector.load %arg4[%c0_1, %c0_2] : memref<32x16xf32, #tpu.memory_space<vmem>>, vector<32x16xf32>
    %cst = arith.constant dense<0.000000e+00> : vector<8x16xf32>
    %3 = tpu.matmul %1, %2, %cst {dimension_numbers = #tpu.dot_dimension_numbers<[1], [0], [0], [1], [0, 0, 1, 1], [], []>} : vector<8x32xf32>, vector<32x16xf32>, vector<8x16xf32> -> vector<8x16xf32>
    %c0_3 = arith.constant 0 : index
    %c0_4 = arith.constant 0 : index
    %4 = vector.load %arg1[%c0_3, %c0_4] : memref<8x1xi32, #tpu.memory_space<vmem>>, vector<8x1xi32>
    %c0_5 = arith.constant 0 : index
    %c0_6 = arith.constant 0 : index
    %5 = vector.load %arg2[%c0_5, %c0_6] : memref<1x16xi32, #tpu.memory_space<vmem>>, vector<1x16xi32>
    %6 = vector.broadcast %4 : vector<8x1xi32> to vector<8x16xi32>
    %7 = vector.broadcast %5 : vector<1x16xi32> to vector<8x16xi32>
    %8 = arith.cmpi eq, %6, %7 : vector<8x16xi32>
    %9 = tpu.iota {dimensions = array<i32: 0>} : vector<8x16xi32>
    %10 = vector.broadcast %0 : i32 to vector<8x16xi32>
    %11 = arith.addi %10, %9 : vector<8x16xi32>
    %12 = tpu.iota {dimensions = array<i32: 1>} : vector<8x16xi32>
    %13 = arith.cmpi ne, %12, %11 : vector<8x16xi32>
    %14 = arith.andi %8, %13 : vector<8x16xi1>
    %cst_7 = arith.constant dense<0xFF800000> : vector<8xf32>
    %15 = vector.multi_reduction <maximumf>, %3, %cst_7 [1] : vector<8x16xf32> to vector<8xf32>
    %16 = vector.shape_cast %15 : vector<8xf32> to vector<8x1xf32>
    %17 = vector.broadcast %16 : vector<8x1xf32> to vector<8x16xf32>
    %18 = arith.subf %3, %17 : vector<8x16xf32>
    %cst_8 = arith.constant 14.2857141 : f32
    %19 = vector.broadcast %cst_8 : f32 to vector<8x16xf32>
    %20 = arith.mulf %18, %19 : vector<8x16xf32>
    %21 = math.exp %20 : vector<8x16xf32>
    %cst_9 = arith.constant 0.000000e+00 : f32
    %22 = vector.broadcast %cst_9 : f32 to vector<8x16xf32>
    %23 = arith.select %13, %21, %22 : vector<8x16xi1>, vector<8x16xf32>
    %cst_10 = arith.constant dense<0.000000e+00> : vector<8xf32>
    %24 = vector.multi_reduction <add>, %23, %cst_10 [1] : vector<8x16xf32> to vector<8xf32>
    %25 = vector.shape_cast %24 : vector<8xf32> to vector<8x1xf32>
    %cst_11 = arith.constant 0.000000e+00 : f32
    %26 = vector.broadcast %cst_11 : f32 to vector<8x16xf32>
    %27 = arith.select %14, %20, %26 : vector<8x16xi1>, vector<8x16xf32>
    %cst_12 = arith.constant dense<0.000000e+00> : vector<8xf32>
    %28 = vector.multi_reduction <add>, %27, %cst_12 [1] : vector<8x16xf32> to vector<8xf32>
    %29 = vector.shape_cast %28 : vector<8xf32> to vector<8x1xf32>
    %30 = arith.extui %8 : vector<8x16xi1> to vector<8x16xi32>
    %31 = arith.sitofp %30 : vector<8x16xi32> to vector<8x16xf32>
    %cst_13 = arith.constant dense<0.000000e+00> : vector<8xf32>
    %32 = vector.multi_reduction <add>, %31, %cst_13 [1] : vector<8x16xf32> to vector<8xf32>
    %33 = vector.shape_cast %32 : vector<8xf32> to vector<8x1xf32>
    %cst_14 = arith.constant 1.000000e+00 : f32
    %34 = vector.broadcast %cst_14 : f32 to vector<8x1xf32>
    %35 = arith.subf %33, %34 : vector<8x1xf32>
    %36 = math.log %25 : vector<8x1xf32>
    %37 = arith.mulf %35, %36 : vector<8x1xf32>
    %38 = arith.subf %29, %37 : vector<8x1xf32>
    %39 = arith.divf %38, %35 : vector<8x1xf32>
    %cst_15 = arith.constant -1.000000e+00 : f32
    %40 = vector.broadcast %cst_15 : f32 to vector<8x1xf32>
    %41 = arith.mulf %40, %39 : vector<8x1xf32>
    %c0_16 = arith.constant 0 : index
    %c0_17 = arith.constant 0 : index
    %42 = vector.load %arg5[%c0_16, %c0_17] : memref<8x1xf32, #tpu.memory_space<vmem>>, vector<8x1xf32>
    tpu.vector_store %arg5[%c0_16, %c0_17], %41 {strides = array<i32>} : memref<8x1xf32, #tpu.memory_space<vmem>>, vector<8x1xf32>,
    return
  }
  func.func @transform_0(%arg0: i32) -> (i32, i32) {
    %c0_i32 = arith.constant 0 : i32
    %c0_i32_0 = arith.constant 0 : i32
    return %arg0, %c0_i32 : i32, i32
  }
  func.func @transform_1(%arg0: i32) -> (i32, i32) {
    %c0_i32 = arith.constant 0 : i32
    %c0_i32_0 = arith.constant 0 : i32
    %c0_i32_1 = arith.constant 0 : i32
    return %c0_i32, %c0_i32_0 : i32, i32
  }
  func.func @transform_2(%arg0: i32) -> (i32, i32) {
    %c0_i32 = arith.constant 0 : i32
    %c0_i32_0 = arith.constant 0 : i32
    return %arg0, %c0_i32 : i32, i32
  }
  func.func @transform_3(%arg0: i32) -> (i32, i32) {
    %c0_i32 = arith.constant 0 : i32
    %c0_i32_0 = arith.constant 0 : i32
    %c0_i32_1 = arith.constant 0 : i32
    return %c0_i32, %c0_i32_0 : i32, i32
  }
  func.func @transform_4(%arg0: i32) -> (i32, i32) {
    %c0_i32 = arith.constant 0 : i32
    %c0_i32_0 = arith.constant 0 : i32
    return %arg0, %c0_i32 : i32, i32
  }
}

</mosaic_0001>

<llo_original>
// kernel: tpu_custom_call.1
$region0: #{tpu_custom_call.1}
  #allocation0 [shape = 'u32[]', space=smem, size = 0x4, offset = 0x4, fixed_abs, tag = 'smem constant byte address 0x4 - core index']
  #allocation1 [shape = 'u32[144,128]{1,0:T(1,128)}', space=vmem, size = 0x12000, scoped, tag = 'internal scratch']
  %s0 = inlined_call_operand.vmem [shape: s32[8,1], index: 0, kind: input, shape index: {}]
  %s1 = inlined_call_operand.vmem [shape: s32[1,16], index: 1, kind: input, shape index: {}]
  %s2 = inlined_call_operand.vmem [shape: f32[8,32], index: 2, kind: input, shape index: {}]
  %s3 = inlined_call_operand.vmem [shape: f32[32,16], index: 3, kind: input, shape index: {}]
  %s4 = inlined_call_operand.vmem [shape: f32[8,1], index: 4, kind: output, shape index: {}]
  %s5 = sld [smem:[#allocation0]]
  $region26: #{tpu_custom_call.1} parent=0
    _
  %s7 = ssub.s32 1, %s5
  %s8 = scalar_select 0, %s7, %s5
  // Predicated region
  $region2: #{tpu_custom_call.1} parent=0 // pred_check
    _
  $region3: #{tpu_custom_call.1} parent=0 // pred_check_branch
    %10 = sbr.rel (0) target = $region5
  $region4: #{tpu_custom_call.1} parent=0 // pred_region
    _
  $region5: #{tpu_custom_call.1} parent=0 // pred_fallthru
    _
  // Predicated region
  $region6: #{tpu_custom_call.1} parent=0 // pred_check
    _
  $region7: #{tpu_custom_call.1} parent=0 // pred_check_branch
    %12 = sbr.rel (0) target = $region9
  $region8: #{tpu_custom_call.1} parent=0 // pred_region
    _
  $region9: #{tpu_custom_call.1} parent=0 // pred_fallthru
    _
  // Predicated region
  $region10: #{tpu_custom_call.1} parent=0 // pred_check
    _
  $region11: #{tpu_custom_call.1} parent=0 // pred_check_branch
    %14 = sbr.rel (0) target = $region13
  $region12: #{tpu_custom_call.1} parent=0 // pred_region
    _
  $region13: #{tpu_custom_call.1} parent=0 // pred_fallthru
    _
  // Predicated region
  $region14: #{tpu_custom_call.1} parent=0 // pred_check
    _
  $region15: #{tpu_custom_call.1} parent=0 // pred_check_branch
    %16 = sbr.rel (0) target = $region17
  $region16: #{tpu_custom_call.1} parent=0 // pred_region
    _
  $region17: #{tpu_custom_call.1} parent=0 // pred_fallthru
    _
  %s17 = smul.u32 0, 8
  %v18 = vld [vmem:[%s2] sm:$0xff]
  %v19 = vld [vmem:[%s3] sm:$0xff]
  %v20 = vld [vmem:[%s3 + $0x8] sm:$0xff]
  %v21 = vld [vmem:[%s3 + $0x10] sm:$0xff]
  %v22 = vld [vmem:[%s3 + $0x18] sm:$0xff]
  %vm23 = vcmask 261120
  %v25 = vsel %vm23, %v18, 0
  %27 = vmatprep.subr.mxu0 0.0
  %28 = vmatpush1.msra.mxu0 0.0
  %29 = vmatprep.subr.mxu0 0.0
  %30 = vmatpush1.msra.mxu0 0.0
  %31 = vmatprep.subr.mxu0 0.0
  %32 = vmatpush1.msra.mxu0 0.0
  %33 = vmatprep.subr.mxu0 0.0
  %34 = vmatpush1.msra.mxu0 0.0
  %35 = vmatprep.subr.mxu0 0.0
  %36 = vmatpush1.msra.mxu0 0.0
  %37 = vmatprep.subr.mxu0 0.0
  %38 = vmatpush1.msra.mxu0 0.0
  %39 = vmatprep.subr.mxu0 0.0
  %40 = vmatpush1.msra.mxu0 0.0
  %41 = vmatprep.subr.mxu0 0.0
  %42 = vmatpush1.msra.mxu0 0.0
  %43 = vmatprep.subr.mxu0 0.0
  %44 = vmatpush1.msra.mxu0 0.0
  %45 = vmatprep.subr.mxu0 0.0
  %46 = vmatpush1.msra.mxu0 0.0
  %47 = vmatprep.subr.mxu0 0.0
  %48 = vmatpush1.msra.mxu0 0.0
  %49 = vmatprep.subr.mxu0 0.0
  %50 = vmatpush1.msra.mxu0 0.0
  %51 = vmatprep.subr.mxu0 0.0
  %52 = vmatpush1.msra.mxu0 %v22
  %53 = vmatprep.subr.mxu0 0.0
  %54 = vmatpush1.msra.mxu0 %v21
  %55 = vmatprep.subr.mxu0 0.0
  %56 = vmatpush1.msra.mxu0 %v20
  %57 = vmatprep.subr.mxu0 0.0
  %58 = vmatpush1.msra.mxu0 %v19
  %59 = vmatprep.subr.mxu0 0.0
  %60 = vmatpush2.msra.mxu0 0.0
  %61 = vmatprep.subr.mxu0 0.0
  %62 = vmatpush2.msra.mxu0 0.0
  %63 = vmatprep.subr.mxu0 0.0
  %64 = vmatpush2.msra.mxu0 0.0
  %65 = vmatprep.subr.mxu0 0.0
  %66 = vmatpush2.msra.mxu0 0.0
  %67 = vmatprep.subr.mxu0 0.0
  %68 = vmatpush2.msra.mxu0 0.0
  %69 = vmatprep.subr.mxu0 0.0
  %70 = vmatpush2.msra.mxu0 0.0
  %71 = vmatprep.subr.mxu0 0.0
  %72 = vmatpush2.msra.mxu0 0.0
  %73 = vmatprep.subr.mxu0 0.0
  %74 = vmatpush2.msra.mxu0 0.0
  %75 = vmatprep.subr.mxu0 0.0
  %76 = vmatpush2.msra.mxu0 0.0
  %77 = vmatprep.subr.mxu0 0.0
  %78 = vmatpush2.msra.mxu0 0.0
  %79 = vmatprep.subr.mxu0 0.0
  %80 = vmatpush2.msra.mxu0 0.0
  %81 = vmatprep.subr.mxu0 0.0
  %82 = vmatpush2.msra.mxu0 0.0
  %83 = vmatprep.subr.mxu0 0.0
  %84 = vmatpush2.msra.mxu0 0.0
  %85 = vmatprep.subr.mxu0 0.0
  %86 = vmatpush2.msra.mxu0 0.0
  %87 = vmatprep.subr.mxu0 0.0
  %88 = vmatpush2.msra.mxu0 0.0
  %89 = vmatprep.subr.mxu0 0.0
  %90 = vmatpush2.msra.mxu0 0.0
  %91 = vmatprep.mubr.f32.mxu0 0.0
  %92 = vmatmul.mubr.f32.gmra.mxu0 %v25
  %v93 = vpop.f32.mrf.mxu0
  %v94 = vadd.f32 0.0, %v93
  %v95 = vpop.f32.mrf.mxu0
  %96 = vdwg.mxu0
  %v97 = vld [vmem:[%s0] sm:$0xff]
  %v98 = vld [vmem:[%s1] sm:$0x1]
  %99 = vset.pattern.permute.xlu0 0
  %100 = vperm.xlu0 %99, %v97
  %v101 = vpop.permute.xlu0 %100
  %v102 = vlaneseq
  %v103 = vshrl.u32 %v102, 7
  %v104 = vsub.s32 0, %v103
  %v105 = vrot.slane %v98, %v104
  %vm106 = vcmp.eq.s32.totalorder %v101, %v105
  %v107 = vlaneseq
  %v108 = vshrl.u32 %v107, 7
  %v109 = vstv %s17
  %v110 = vadd.s32 %v109, %v108
  %v111 = vlaneseq
  %v112 = vand.u32 %v111, 127
  %vm113 = vcmp.ne.s32.totalorder %v112, %v110
  %vm114 = vmand %vm106, %vm113
  %vm115 = vcmask 130048
  %v116 = vsel %vm115, %v94, -inf
  %117 = vmax.xlane.f32.xlu0 %v116
  %v118 = vpop.xlane.xlu0 %117
  %v119 = vsub.f32 %v94, %v118
  %v120 = vmul.f32 %v119, 14.285714
  %v121 = vmul.f32 %v120, 1.442695
  %v122 = vpow.pop %v121
  %v123 = vsel %vm113, %v122, 0.0
  %v124 = vsel %vm115, %v123, 0.0
  %125 = vadd.xlane.f32.xlu0 %v124
  %v126 = vpop.xlane.xlu0 %125
  %v127 = vsel %vm114, %v120, 0.0
  %v128 = vsel %vm115, %v127, 0.0
  %129 = vadd.xlane.f32.xlu0 %v128
  %v130 = vpop.xlane.xlu0 %129
  %v131 = vsel %vm106, 1, 0
  %v132 = vcvt.s32.f32 %v131
  %v133 = vsel %vm115, %v132, 0.0
  %134 = vadd.xlane.f32.xlu0 %v133
  %v135 = vpop.xlane.xlu0 %134
  %v136 = vsub.f32 %v135, 1.0
  %v137 = vlog2.pop %v126
  %v138 = vmul.f32 %v137, 0.6931472
  %v139 = vmul.f32 %v136, %v138
  %v140 = vsub.f32 %v130, %v139
  %v141 = vrcp.pop %v136
  %v142 = vmul.f32 %v140, %v141
  %v143 = vmul.f32 %v142, -1.0
  %vm144 = vcmask 7168
  %145 = vst.msk [vmem:[%s4] sm:$0xff] %vm144, %v143
  // Predicated region
  $region18: #{tpu_custom_call.1} parent=0 // pred_check
    _
  $region19: #{tpu_custom_call.1} parent=0 // pred_check_branch
    %147 = sbr.rel (0) target = $region21
  $region20: #{tpu_custom_call.1} parent=0 // pred_region
    _
  $region21: #{tpu_custom_call.1} parent=0 // pred_fallthru
    _
  // Predicated region
  $region22: #{tpu_custom_call.1} parent=0 // pred_check
    _
  $region23: #{tpu_custom_call.1} parent=0 // pred_check_branch
    %149 = sbr.rel (0) target = $region25
  $region24: #{tpu_custom_call.1} parent=0 // pred_region
    _
  $region25: #{tpu_custom_call.1} parent=0 // pred_fallthru
    _

// kernel: tpu_custom_call.1
$region0: #{tpu_custom_call.1}
  #allocation0 [shape = 'u32[]', space=smem, size = 0x4, offset = 0x4, fixed_abs, tag = 'smem constant byte address 0x4 - core index']
  #allocation1 [shape = 'u32[144,128]{1,0:T(1,128)}', space=vmem, size = 0x12000, scoped, tag = 'internal scratch']
  %s0 = inlined_call_operand.vmem [shape: s32[8,1], index: 0, kind: input, shape index: {}]
  %s1 = inlined_call_operand.vmem [shape: s32[1,16], index: 1, kind: input, shape index: {}]
  %s2 = inlined_call_operand.vmem [shape: f32[8,32], index: 2, kind: input, shape index: {}]
  %s3 = inlined_call_operand.vmem [shape: f32[32,16], index: 3, kind: input, shape index: {}]
  %s4 = inlined_call_operand.vmem [shape: f32[8,1], index: 4, kind: output, shape index: {}]
  %s5 = sld [smem:[#allocation0]]
  $region26: #{tpu_custom_call.1} parent=0
    _
  %s7 = ssub.s32 1, %s5
  %s8 = scalar_select 0, %s7, %s5
  // Predicated region
  $region2: #{tpu_custom_call.1} parent=0 // pred_check
    _
  $region3: #{tpu_custom_call.1} parent=0 // pred_check_branch
    %10 = sbr.rel (0) target = $region5
  $region4: #{tpu_custom_call.1} parent=0 // pred_region
    _
  $region5: #{tpu_custom_call.1} parent=0 // pred_fallthru
    _
  // Predicated region
  $region6: #{tpu_custom_call.1} parent=0 // pred_check
    _
  $region7: #{tpu_custom_call.1} parent=0 // pred_check_branch
    %12 = sbr.rel (0) target = $region9
  $region8: #{tpu_custom_call.1} parent=0 // pred_region
    _
  $region9: #{tpu_custom_call.1} parent=0 // pred_fallthru
    _
  // Predicated region
  $region10: #{tpu_custom_call.1} parent=0 // pred_check
    _
  $region11: #{tpu_custom_call.1} parent=0 // pred_check_branch
    %14 = sbr.rel (0) target = $region13
  $region12: #{tpu_custom_call.1} parent=0 // pred_region
    _
  $region13: #{tpu_custom_call.1} parent=0 // pred_fallthru
    _
  // Predicated region
  $region14: #{tpu_custom_call.1} parent=0 // pred_check
    _
  $region15: #{tpu_custom_call.1} parent=0 // pred_check_branch
    %16 = sbr.rel (0) target = $region17
  $region16: #{tpu_custom_call.1} parent=0 // pred_region
    _
  $region17: #{tpu_custom_call.1} parent=0 // pred_fallthru
    _
  %s17 = smul.u32 0, 8
  %v18 = vld [vmem:[%s2] sm:$0xff]
  %v19 = vld [vmem:[%s3] sm:$0xff]
  %v20 = vld [vmem:[%s3 + $0x8] sm:$0xff]
  %v21 = vld [vmem:[%s3 + $0x10] sm:$0xff]
  %v22 = vld [vmem:[%s3 + $0x18] sm:$0xff]
  %vm23 = vcmask 261120
  %v25 = vsel %vm23, %v18, 0
  %27 = vmatprep.subr.mxu0 0.0
  %28 = vmatpush1.msra.mxu0 0.0
  %29 = vmatprep.subr.mxu0 0.0
  %30 = vmatpush1.msra.mxu0 0.0
  %31 = vmatprep.subr.mxu0 0.0
  %32 = vmatpush1.msra.mxu0 0.0
  %33 = vmatprep.subr.mxu0 0.0
  %34 = vmatpush1.msra.mxu0 0.0
  %35 = vmatprep.subr.mxu0 0.0
  %36 = vmatpush1.msra.mxu0 0.0
  %37 = vmatprep.subr.mxu0 0.0
  %38 = vmatpush1.msra.mxu0 0.0
  %39 = vmatprep.subr.mxu0 0.0
  %40 = vmatpush1.msra.mxu0 0.0
  %41 = vmatprep.subr.mxu0 0.0
  %42 = vmatpush1.msra.mxu0 0.0
  %43 = vmatprep.subr.mxu0 0.0
  %44 = vmatpush1.msra.mxu0 0.0
  %45 = vmatprep.subr.mxu0 0.0
  %46 = vmatpush1.msra.mxu0 0.0
  %47 = vmatprep.subr.mxu0 0.0
  %48 = vmatpush1.msra.mxu0 0.0
  %49 = vmatprep.subr.mxu0 0.0
  %50 = vmatpush1.msra.mxu0 0.0
  %51 = vmatprep.subr.mxu0 0.0
  %52 = vmatpush1.msra.mxu0 %v22
  %53 = vmatprep.subr.mxu0 0.0
  %54 = vmatpush1.msra.mxu0 %v21
  %55 = vmatprep.subr.mxu0 0.0
  %56 = vmatpush1.msra.mxu0 %v20
  %57 = vmatprep.subr.mxu0 0.0
  %58 = vmatpush1.msra.mxu0 %v19
  %59 = vmatprep.subr.mxu0 0.0
  %60 = vmatpush2.msra.mxu0 0.0
  %61 = vmatprep.subr.mxu0 0.0
  %62 = vmatpush2.msra.mxu0 0.0
  %63 = vmatprep.subr.mxu0 0.0
  %64 = vmatpush2.msra.mxu0 0.0
  %65 = vmatprep.subr.mxu0 0.0
  %66 = vmatpush2.msra.mxu0 0.0
  %67 = vmatprep.subr.mxu0 0.0
  %68 = vmatpush2.msra.mxu0 0.0
  %69 = vmatprep.subr.mxu0 0.0
  %70 = vmatpush2.msra.mxu0 0.0
  %71 = vmatprep.subr.mxu0 0.0
  %72 = vmatpush2.msra.mxu0 0.0
  %73 = vmatprep.subr.mxu0 0.0
  %74 = vmatpush2.msra.mxu0 0.0
  %75 = vmatprep.subr.mxu0 0.0
  %76 = vmatpush2.msra.mxu0 0.0
  %77 = vmatprep.subr.mxu0 0.0
  %78 = vmatpush2.msra.mxu0 0.0
  %79 = vmatprep.subr.mxu0 0.0
  %80 = vmatpush2.msra.mxu0 0.0
  %81 = vmatprep.subr.mxu0 0.0
  %82 = vmatpush2.msra.mxu0 0.0
  %83 = vmatprep.subr.mxu0 0.0
  %84 = vmatpush2.msra.mxu0 0.0
  %85 = vmatprep.subr.mxu0 0.0
  %86 = vmatpush2.msra.mxu0 0.0
  %87 = vmatprep.subr.mxu0 0.0
  %88 = vmatpush2.msra.mxu0 0.0
  %89 = vmatprep.subr.mxu0 0.0
  %90 = vmatpush2.msra.mxu0 0.0
  %91 = vmatprep.mubr.f32.mxu0 0.0
  %92 = vmatmul.mubr.f32.gmra.mxu0 %v25
  %v93 = vpop.f32.mrf.mxu0
  %v94 = vadd.f32 0.0, %v93
  %v95 = vpop.f32.mrf.mxu0
  %96 = vdwg.mxu0
  %v97 = vld [vmem:[%s0] sm:$0xff]
  %v98 = vld [vmem:[%s1] sm:$0x1]
  %99 = vset.pattern.permute.xlu0 0
  %100 = vperm.xlu0 %99, %v97
  %v101 = vpop.permute.xlu0 %100
  %v102 = vlaneseq
  %v103 = vshrl.u32 %v102, 7
  %v104 = vsub.s32 0, %v103
  %v105 = vrot.slane %v98, %v104
  %vm106 = vcmp.eq.s32.totalorder %v101, %v105
  %v107 = vlaneseq
  %v108 = vshrl.u32 %v107, 7
  %v109 = vstv %s17
  %v110 = vadd.s32 %v109, %v108
  %v111 = vlaneseq
  %v112 = vand.u32 %v111, 127
  %vm113 = vcmp.ne.s32.totalorder %v112, %v110
  %vm114 = vmand %vm106, %vm113
  %vm115 = vcmask 130048
  %v116 = vsel %vm115, %v94, -inf
  %117 = vmax.xlane.f32.xlu0 %v116
  %v118 = vpop.xlane.xlu0 %117
  %v119 = vsub.f32 %v94, %v118
  %v120 = vmul.f32 %v119, 14.285714
  %v121 = vmul.f32 %v120, 1.442695
  %v122 = vpow.pop %v121
  %v123 = vsel %vm113, %v122, 0.0
  %v124 = vsel %vm115, %v123, 0.0
  %125 = vadd.xlane.f32.xlu0 %v124
  %v126 = vpop.xlane.xlu0 %125
  %v127 = vsel %vm114, %v120, 0.0
  %v128 = vsel %vm115, %v127, 0.0
  %129 = vadd.xlane.f32.xlu0 %v128
  %v130 = vpop.xlane.xlu0 %129
  %v131 = vsel %vm106, 1, 0
  %v132 = vcvt.s32.f32 %v131
  %v133 = vsel %vm115, %v132, 0.0
  %134 = vadd.xlane.f32.xlu0 %v133
  %v135 = vpop.xlane.xlu0 %134
  %v136 = vsub.f32 %v135, 1.0
  %v137 = vlog2.pop %v126
  %v138 = vmul.f32 %v137, 0.6931472
  %v139 = vmul.f32 %v136, %v138
  %v140 = vsub.f32 %v130, %v139
  %v141 = vrcp.pop %v136
  %v142 = vmul.f32 %v140, %v141
  %v143 = vmul.f32 %v142, -1.0
  %vm144 = vcmask 7168
  %145 = vst.msk [vmem:[%s4] sm:$0xff] %vm144, %v143
  // Predicated region
  $region18: #{tpu_custom_call.1} parent=0 // pred_check
    _
  $region19: #{tpu_custom_call.1} parent=0 // pred_check_branch
    %147 = sbr.rel (0) target = $region21
  $region20: #{tpu_custom_call.1} parent=0 // pred_region
    _
  $region21: #{tpu_custom_call.1} parent=0 // pred_fallthru
    _
  // Predicated region
  $region22: #{tpu_custom_call.1} parent=0 // pred_check
    _
  $region23: #{tpu_custom_call.1} parent=0 // pred_check_branch
    %149 = sbr.rel (0) target = $region25
  $region24: #{tpu_custom_call.1} parent=0 // pred_region
    _
  $region25: #{tpu_custom_call.1} parent=0 // pred_fallthru
    _

</llo_original>
